<compile_context>
chip_gen: v7x
topology: tpu7x:2x2x1
jax: 0.10.0
libtpu: 0.0.40
codegen_flags: <defaults>
</compile_context>

<pallas_src>
import math

import jax
import jax.numpy as jnp
from jax.experimental import pallas as pl
from jax.experimental.pallas import tpu as pltpu


def _identity_kernel(x_ref, o_ref):
    # Pure elementwise pass-through on the VMEM tile.
    o_ref[...] = x_ref[...]


def _sublane_min(dtype) -> int:
    itemsize = jnp.dtype(dtype).itemsize
    return {4: 8, 2: 16, 1: 32}.get(itemsize, 8)


def _generation_block_params():
    """(block_bytes, vmem_limit_bytes) tuned per TPU generation."""
    phys_vmem = 128 * 1024 * 1024  # v5e / v6e physical VMEM
    try:
        info = pltpu.get_tpu_info()
        cap = getattr(info, "vmem_capacity_bytes", None)
        if cap:
            phys_vmem = int(cap)
    except Exception:
        pass
    if phys_vmem <= 64 * 1024 * 1024:
        # v7x: bigger blocks amortize the fixed per-grid-step overhead at
        # 3.2 TB/s; 4 live 8 MiB tiles = 32 MiB, well under the 40 MiB limit
        # and the 64 MiB physical VMEM.
        return 8 * 1024 * 1024, 40 * 1024 * 1024
    # v5e / v6e: 128 MiB physical VMEM; 4 MiB blocks are on the measured
    # 85-86% copy-roofline plateau.  Explicit limit avoids compiler-side
    # window shrinking (v5e default scoped VMEM is only 16 MiB).
    return 4 * 1024 * 1024, 48 * 1024 * 1024


def _pick_2d_layout(total, dtype, block_bytes):
    """Pick a (rows, lanes) factorization with lanes a multiple of 128.

    Prefers the widest lane dim that still leaves enough rows for multiple
    pipelined grid steps; falls back to any valid factorization.
    """
    smin = _sublane_min(dtype)
    itemsize = jnp.dtype(dtype).itemsize
    fallback = None
    for lanes in (4096, 2048, 1024, 512, 256, 128):
        if total % lanes:
            continue
        rows = total // lanes
        if rows % smin:
            continue
        if fallback is None:
            fallback = (rows, lanes)
        budget_rows = max(smin, (block_bytes // (lanes * itemsize)) // smin * smin)
        # Enough rows for >=2 full-budget grid steps (or enough slack that we
        # can shrink the block to get >=4 steps) -> good pipelining / 2-TC
        # sharding on v7x.
        if rows >= 2 * budget_rows or rows >= 4 * smin:
            return rows, lanes
    return fallback


def _pick_tr(rows, cols, itemsize, smin, block_bytes):
    """Row-block size: a divisor of `rows` (no ragged tail) under the budget."""
    budget_rows = max(smin, (block_bytes // max(1, cols * itemsize)) // smin * smin)
    # Prefer >=4 grid steps when there is room (pipelining needs i+1/i-1
    # overlap; v7x wants >=2 steps to split across TensorCores).
    if rows >= 4 * smin:
        desired_steps = 4
    elif rows >= 2 * smin:
        desired_steps = 2
    else:
        desired_steps = 1
    cap = max(smin, (rows // desired_steps) // smin * smin)
    budget_rows = min(budget_rows, cap, rows)

    best = None
    tr = smin
    while tr <= budget_rows:
        if rows % tr == 0:
            best = tr  # largest divisor of rows (multiple of smin) under budget
        tr += smin
    if best is not None:
        return best
    # No clean divisor under the budget: accept one masked tail block.
    return budget_rows


def _tiled_row_copy(x2d, block_bytes, vmem_limit):
    """Tiled, aliased identity copy of a 2-D slab (rows tiled, cols full)."""
    rows, cols = x2d.shape
    dtype = x2d.dtype
    itemsize = jnp.dtype(dtype).itemsize
    smin = _sublane_min(dtype)

    tr = _pick_tr(rows, cols, itemsize, smin, block_bytes)
    # Block sublane dim must be a multiple of the sublane tile or equal the
    # full dim; tiny row counts just take the whole array in one block.
    if tr != rows and tr % smin != 0:
        tr = rows
    grid = (pl.cdiv(rows, tr),)

    # TODO(synk): on v7x, verify plain "parallel" shards the single grid axis
    # across both TensorCores; otherwise switch to CORE_PARALLEL / core_map.
    return pl.pallas_call(
        _identity_kernel,
        out_shape=jax.ShapeDtypeStruct((rows, cols), dtype),
        grid_spec=pl.GridSpec(
            grid=grid,
            in_specs=[pl.BlockSpec((tr, cols), lambda i: (i, 0))],
            out_specs=pl.BlockSpec((tr, cols), lambda i: (i, 0)),
        ),
        input_output_aliases={0: 0},
        compiler_params=pltpu.CompilerParams(
            dimension_semantics=("parallel",),
            vmem_limit_bytes=vmem_limit,
        ),
        cost_estimate=pl.CostEstimate(
            flops=0,
            transcendentals=0,
            bytes_accessed=2 * rows * cols * itemsize,
        ),
    )(x2d)


def encoder_identity_pallas(x, *, elide=False):
    """Runs the (identity) hot path of Encoder.forward as a Pallas kernel.

    Accepts NCHW input, returns an array identical to `x`.  With
    `elide=True` the kernel is skipped entirely (recommended in production:
    an identity copy whose output aliases its input is pure redundant HBM
    traffic and skipping it is semantically identical).
    """
    if elide:
        return x

    orig_shape = x.shape
    total = math.prod(orig_shape)
    block_bytes, vmem_limit = _generation_block_params()

    layout = _pick_2d_layout(total, x.dtype, block_bytes)
    if layout is not None:
        rows, lanes = layout
        x2d = jnp.reshape(x, (rows, lanes))          # contiguous, no padding
    else:
        # Lane-dense fallback: (N, C*H*W) contiguous reshape; block last dim
        # equals the full dim, so stores stay as wide as the shape allows.
        lead = orig_shape[0] if len(orig_shape) > 1 else 1
        x2d = jnp.reshape(x, (lead, total // max(1, lead)))

    out2d = _tiled_row_copy(x2d, block_bytes, vmem_limit)
    return jnp.reshape(out2d, orig_shape)


# Donated-argument entry point: lets XLA honor input_output_aliases={0: 0}
# end-to-end (no defensive copy of x before the kernel).  The donated buffer
# must not be reused by the caller afterwards.
_encoder_identity_donated = jax.jit(
    lambda a: encoder_identity_pallas(a), donate_argnums=0
)


def encoder_forward(x):
    """Faithful equivalent of the PyTorch Encoder.forward(x).

    The reference forward body is `pass`, so it returns None.
    """
    # TODO(synk): reference Encoder.forward is empty (`pass`) and returns None;
    # there is no compute to translate.  The identity kernel above is the only
    # meaningful tensor path and is exercised separately.
    del x
    return None


if __name__ == "__main__":
    key = jax.random.PRNGKey(0)
    # Small NCHW input consistent with an image-encoder interface.
    x = jax.random.normal(key, (2, 4, 16, 16), dtype=jnp.float32)

    # 1) Plain kernel path (identity hot path), block on the result.
    y = jax.block_until_ready(encoder_identity_pallas(x))
    assert y.shape == x.shape and y.dtype == x.dtype
    assert bool(jnp.allclose(y, x))

    # 2) Donated / fully-aliased path: donate a separate copy of x so the
    #    pallas_call's input_output_aliases takes effect without a defensive
    #    HBM copy.  (x_donor must not be used after this call.)
    x_donor = jnp.array(x)
    y2 = jax.block_until_ready(_encoder_identity_donated(x_donor))
    assert bool(jnp.allclose(y2, y))

    # 3) Production elision path: identity + aliasing => skipping is free and
    #    semantically identical.
    y3 = encoder_identity_pallas(x, elide=True)
    assert y3 is x

    # Mirror the exact reference semantics: forward returns None.
    assert encoder_forward(x) is None

    print("KERNEL_OK")
</pallas_src>

<mosaic_0001>
module attributes {stable_mosaic.version = 11 : i64} {
  func.func @_identity_kernel(%arg0: i32, %arg1: memref<8x256xf32, #tpu.memory_space<vmem>>, %arg2: memref<8x256xf32, #tpu.memory_space<vmem>>) attributes {dimension_semantics = [#tpu.dimension_semantics<parallel>], iteration_bounds = array<i64: 1>, scalar_prefetch = 0 : i64, scratch_operands = 0 : i64, tpu.core_type = #tpu.core_type<tc>, window_params = [{transform_indices = @transform_0, window_bounds = array<i64: 8, 256>}, {transform_indices = @transform_1, window_bounds = array<i64: 8, 256>}]} {
    %c0 = arith.constant 0 : index
    %c0_0 = arith.constant 0 : index
    %0 = vector.load %arg1[%c0, %c0_0] : memref<8x256xf32, #tpu.memory_space<vmem>>, vector<8x256xf32>
    %c0_1 = arith.constant 0 : index
    %c0_2 = arith.constant 0 : index
    %1 = vector.load %arg2[%c0_1, %c0_2] : memref<8x256xf32, #tpu.memory_space<vmem>>, vector<8x256xf32>
    tpu.vector_store %arg2[%c0_1, %c0_2], %0 {strides = array<i32>} : memref<8x256xf32, #tpu.memory_space<vmem>>, vector<8x256xf32>,
    return
  }
  func.func @transform_0(%arg0: i32) -> (i32, i32) {
    %c0_i32 = arith.constant 0 : i32
    %c0_i32_0 = arith.constant 0 : i32
    return %arg0, %c0_i32 : i32, i32
  }
  func.func @transform_1(%arg0: i32) -> (i32, i32) {
    %c0_i32 = arith.constant 0 : i32
    %c0_i32_0 = arith.constant 0 : i32
    return %arg0, %c0_i32 : i32, i32
  }
}

</mosaic_0001>

<llo_original>
// kernel: tpu_custom_call.1
$region0: #{tpu_custom_call.1}
  #allocation0 [shape = 'u32[]', space=smem, size = 0x4, offset = 0x4, fixed_abs, tag = 'smem constant byte address 0x4 - core index']
  #allocation1 [shape = 'u32[144,128]{1,0:T(1,128)}', space=vmem, size = 0x12000, scoped, tag = 'internal scratch']
  %s0 = inlined_call_operand.hbm [shape: f32[8,256], index: 0, kind: input, shape index: {}, may-alias: {0,1}]
  %s1 = inlined_call_operand.hbm [shape: f32[8,256], index: 1, kind: output, shape index: {}, may-alias: {0,1}]
  %s2 = sld [smem:[#allocation0]]
  $region18: #{tpu_custom_call.1} parent=0
    _
  %s4 = ssub.s32 1, %s2
  %s5 = scalar_select 0, %s4, %s2
  $region1: #{tpu_custom_call.1} parent=0
    #allocation2 [shape = 'u8[8192]{0}', space=vmem, size = 0x2000, scoped, tag = 'input window, operand 0, single buffered']
    #allocation3 [shape = 's32[1]{0}', space=sflag, size = 0x4, scoped, tag = 'scoped memory for tpu_custom_call.1']
    #allocation4 [shape = 's32[1]{0}', space=sflag, size = 0x4, scoped, tag = 'scoped memory for tpu_custom_call.1']
    #allocation5 [shape = 'u8[8192]{0}', space=vmem, size = 0x2000, scoped, tag = 'output window, operand 0, single buffered']
    %6 = vsyncpa [#allocation3], 0
    %7 = vsyncpa [#allocation4], 0
    // Predicated region
    $region2: #{tpu_custom_call.1} parent=1 // pred_check
      _
    $region3: #{tpu_custom_call.1} parent=1 // pred_check_branch
      %9 = sbr.rel (0) target = $region5
    $region4: #{tpu_custom_call.1} parent=1 // pred_region
      %s11 = ssub.s32 256, 256
      %12 = vsyncadd [#allocation3], %s11
      %s14 = sshll.u32 [#allocation2], 4
      %s15 = int_to_ptr.vmem [resolvable:$true] %s14
      %17 = dma.hbm_to_vmem [thread:$0]  %s0, 256, %s15, [#allocation3]
    $region5: #{tpu_custom_call.1} parent=1 // pred_fallthru
      _
    // Predicated region
    $region6: #{tpu_custom_call.1} parent=1 // pred_check
      _
    $region7: #{tpu_custom_call.1} parent=1 // pred_check_branch
      %19 = sbr.rel (0) target = $region9
    $region8: #{tpu_custom_call.1} parent=1 // pred_region
      %20 = dma.done [#allocation3], 256
    $region9: #{tpu_custom_call.1} parent=1 // pred_fallthru
      _
    %v21 = vld [vmem:[#allocation2] sm:$0xff]
    %v22 = vld [vmem:[#allocation2 + $0x8] sm:$0xff]
    %23 = vst [vmem:[#allocation5] sm:$0xff] %v21
    %24 = vst [vmem:[#allocation5 + $0x8] sm:$0xff] %v22
    // Predicated region
    $region10: #{tpu_custom_call.1} parent=1 // pred_check
      _
    $region11: #{tpu_custom_call.1} parent=1 // pred_check_branch
      %26 = sbr.rel (0) target = $region13
    $region12: #{tpu_custom_call.1} parent=1 // pred_region
      %s28 = ssub.s32 256, 256
      %29 = vsyncadd [#allocation4], %s28
      %s31 = sshll.u32 [#allocation5], 4
      %s32 = int_to_ptr.vmem [resolvable:$true] %s31
      %34 = dma.vmem_to_hbm [thread:$0]  %s32, 256, %s1, [#allocation4]
    $region13: #{tpu_custom_call.1} parent=1 // pred_fallthru
      _
    // Predicated region
    $region14: #{tpu_custom_call.1} parent=1 // pred_check
      _
    $region15: #{tpu_custom_call.1} parent=1 // pred_check_branch
      %36 = sbr.rel (0) target = $region17
    $region16: #{tpu_custom_call.1} parent=1 // pred_region
      %37 = dma.done [#allocation4], 256
    $region17: #{tpu_custom_call.1} parent=1 // pred_fallthru
      _
    %38 = vsyncpa [#allocation3], 1
    %39 = vsyncpa [#allocation4], 1

</llo_original>
